<compile_context>
chip_gen: v7x
topology: tpu7x:2x2x1
jax: 0.10.0
libtpu: 0.0.40
codegen_flags: <defaults>
</compile_context>

<pallas_src>
import functools
import math

import jax
import jax.numpy as jnp
from jax.experimental import pallas as pl
from jax.experimental.pallas import tpu as pltpu


def _tpu_generation() -> int:
    """Best-effort TPU generation (5, 6, 7, ...) from the device kind string."""
    try:
        kind = jax.devices()[0].device_kind.lower()
    except Exception:
        return 0
    for gen in (7, 6, 5, 4):
        if f"v{gen}" in kind:
            return gen
    return 0


# Per-block byte budget.  Pallas double-buffers in + out, so steady-state VMEM is
# ~4x this; the values below stay inside each generation's default scoped VMEM
# limit (v5e 16 MiB, v6e 32 MiB, v7x 32 MiB of 64 MiB physical).
_BLOCK_CAP_BYTES = {5: 3 * 2**20, 6: 5 * 2**20, 7: 6 * 2**20}
_DEFAULT_BLOCK_CAP = 3 * 2**20


def _drop_path_kernel(scale_ref, x_ref, o_ref, *, compute_dtype):
    """o = x * scale; scale is a per-sample (TB, 1, 1) factor in {0, 1/keep_prob}."""
    s = scale_ref[...].astype(compute_dtype)                      # (TB, 1, 1)
    o_ref[...] = (x_ref[...].astype(compute_dtype) * s).astype(o_ref.dtype)


def _choose_layout(batch: int, padded_elems: int, itemsize: int, cap_bytes: int):
    """Lane-dense (R, C) factorization of a 128-padded sample + (TB, TR) tiling."""
    # padded_elems is a multiple of 128, so C >= 128 is guaranteed (unmasked vst).
    C = 128
    for cand in (1024, 512, 256):
        if padded_elems % cand == 0:
            C = cand
            break
    R = padded_elems // C
    sub = 8 * max(1, 4 // itemsize)          # sublane packing: f32 8, bf16 16, i8 32
    sample_bytes = R * C * itemsize

    if sample_bytes >= cap_bytes:
        # One (row-tiled) sample per block.
        TB = 1
        max_rows = max(sub, cap_bytes // (C * itemsize))
        TR = min(R, max(sub, (max_rows // sub) * sub))
    else:
        # Whole samples per block; grow TB toward the byte budget.
        TR = R
        TB = max(1, min(batch, cap_bytes // sample_bytes))
        if batch >= 2:
            # Keep >= 2 blocks along the (parallel) batch axis so v7x's two
            # TensorCores both get work; no-op on single-TC v5e/v6e.
            TB = min(TB, -(-batch // 2))
        # Largest divisor of batch <= TB: every block stays full (no ragged
        # leading-dim blocks).
        while batch % TB != 0:
            TB -= 1
    return R, C, TB, TR


def drop_path(x, drop_prob: float = 0.0, training: bool = False, seed: int = 0):
    """Pallas DropPath; matches torch drop_path(x, drop_prob, training) forward."""
    if drop_prob == 0.0 or not training:
        return x
    if drop_prob >= 1.0:
        # torch computes x.div(0) * 0 == NaN here; every path is dropped with
        # probability 1, so return zeros instead of dividing by zero at trace time.
        return jnp.zeros_like(x)

    keep_prob = 1.0 - float(drop_prob)
    B = x.shape[0]
    F = int(math.prod(x.shape[1:]))
    itemsize = jnp.dtype(x.dtype).itemsize

    gen = _tpu_generation()
    cap = _BLOCK_CAP_BYTES.get(gen, _DEFAULT_BLOCK_CAP)

    # Multiply in the input dtype for 16-bit floats on v6e/v7x (bf16 VALU); keep
    # f32 compute on v5e (no bf16 VALU) and for every other dtype.
    if gen >= 6 and x.dtype in (jnp.bfloat16, jnp.float16):
        compute_dtype = x.dtype
    else:
        compute_dtype = jnp.float32

    # torch semantics: random_tensor = floor(keep_prob + U[0,1)) per sample.
    u = jax.random.uniform(jax.random.PRNGKey(seed), (B,), dtype=jnp.float32)
    mask = jnp.floor(jnp.float32(keep_prob) + u)                  # {0.0, 1.0}
    scale = (mask * jnp.float32(1.0 / keep_prob)).reshape(B, 1, 1)

    # Lane-dense layout: pad the flattened sample to a multiple of 128 so stores
    # are never masked and the block size stays bounded; slice the output back.
    F_pad = ((F + 127) // 128) * 128
    x_flat = x.reshape(B, F)
    if F_pad != F:
        x_flat = jnp.pad(x_flat, ((0, 0), (0, F_pad - F)))
    R, C, TB, TR = _choose_layout(B, F_pad, itemsize, cap)
    x3 = x_flat.reshape(B, R, C)

    kernel = functools.partial(_drop_path_kernel, compute_dtype=compute_dtype)
    out = pl.pallas_call(
        kernel,
        out_shape=jax.ShapeDtypeStruct((B, R, C), x.dtype),
        grid=(pl.cdiv(B, TB), pl.cdiv(R, TR)),
        in_specs=[
            pl.BlockSpec((TB, 1, 1), lambda b, r: (b, 0, 0)),     # per-sample scale
            pl.BlockSpec((TB, TR, C), lambda b, r: (b, r, 0)),    # x tile
        ],
        out_specs=pl.BlockSpec((TB, TR, C), lambda b, r: (b, r, 0)),
        compiler_params=pltpu.CompilerParams(
            dimension_semantics=("parallel", "parallel")),
    )(scale, x3)

    if F_pad != F:
        return out.reshape(B, F_pad)[:, :F].reshape(x.shape)
    return out.reshape(x.shape)


class DropPath:
    """Mirror of the PyTorch DropPath module (no parameters)."""

    def __init__(self, drop_prob=None):
        self.drop_prob = 0.0 if drop_prob is None else float(drop_prob)
        self.training = True

    def __call__(self, x, seed: int = 0):
        return drop_path(x, self.drop_prob, self.training, seed=seed)


if __name__ == "__main__":
    key = jax.random.PRNGKey(0)

    def check_per_sample(y, x, keep_prob, tol):
        # Each sample must be either zeroed out or scaled by exactly 1/keep_prob.
        for b in range(x.shape[0]):
            yb = jnp.asarray(y[b], jnp.float32)
            xb = jnp.asarray(x[b], jnp.float32)
            is_zero = bool(jnp.all(yb == 0))
            is_scaled = bool(jnp.allclose(yb, xb / keep_prob, rtol=tol, atol=tol))
            assert is_zero or is_scaled, "per-sample drop-path semantics violated"

    # 1) f32, F a multiple of 128 (no padding path).
    B, N, D = 2, 8, 32
    x = jax.random.normal(key, (B, N, D), dtype=jnp.float32)
    layer = DropPath(drop_prob=0.3)
    layer.training = True
    y = jax.block_until_ready(layer(x, seed=123))
    assert y.shape == x.shape and y.dtype == x.dtype
    check_per_sample(y, x, 0.7, 1e-5)

    # 2) f32, F not a multiple of 128 (exercises padding + slice-back).
    x2 = jax.random.normal(jax.random.PRNGKey(1), (3, 5, 7, 6), dtype=jnp.float32)
    y2 = jax.block_until_ready(drop_path(x2, 0.25, True, seed=7))
    assert y2.shape == x2.shape and y2.dtype == x2.dtype
    check_per_sample(y2, x2, 0.75, 1e-5)

    # 3) bf16 (in-dtype multiply on v6e/v7x, f32 on v5e), multi-sample blocks.
    x3 = jax.random.normal(jax.random.PRNGKey(2), (4, 16, 48), dtype=jnp.bfloat16)
    y3 = jax.block_until_ready(drop_path(x3, 0.2, True, seed=11))
    assert y3.shape == x3.shape and y3.dtype == x3.dtype
    check_per_sample(y3, x3, 0.8, 2e-2)

    # 4) Eval mode / drop_prob=0 are identity; drop_prob>=1 drops everything.
    layer.training = False
    assert bool(jnp.array_equal(jax.block_until_ready(layer(x)), x))
    assert bool(jnp.array_equal(drop_path(x, 0.0, True), x))
    assert bool(jnp.all(drop_path(x, 1.0, True) == 0))

    print("KERNEL_OK")
</pallas_src>

<mosaic_0001>
module attributes {stable_mosaic.version = 11 : i64} {
  func.func @_drop_path_kernel(%arg0: i32, %arg1: i32, %arg2: memref<1x1x1xf32, #tpu.memory_space<vmem>>, %arg3: memref<1x1x256xf32, #tpu.memory_space<vmem>>, %arg4: memref<1x1x256xf32, #tpu.memory_space<vmem>>) attributes {dimension_semantics = [#tpu.dimension_semantics<parallel>, #tpu.dimension_semantics<parallel>], iteration_bounds = array<i64: 2, 1>, scalar_prefetch = 0 : i64, scratch_operands = 0 : i64, tpu.core_type = #tpu.core_type<tc>, window_params = [{transform_indices = @transform_0, window_bounds = array<i64: 1, 1, 1>}, {transform_indices = @transform_1, window_bounds = array<i64: 1, 1, 256>}, {transform_indices = @transform_2, window_bounds = array<i64: 1, 1, 256>}]} {
    %c0 = arith.constant 0 : index
    %c0_0 = arith.constant 0 : index
    %c0_1 = arith.constant 0 : index
    %0 = vector.load %arg2[%c0, %c0_0, %c0_1] : memref<1x1x1xf32, #tpu.memory_space<vmem>>, vector<1x1x1xf32>
    %c0_2 = arith.constant 0 : index
    %c0_3 = arith.constant 0 : index
    %c0_4 = arith.constant 0 : index
    %1 = vector.load %arg3[%c0_2, %c0_3, %c0_4] : memref<1x1x256xf32, #tpu.memory_space<vmem>>, vector<1x1x256xf32>
    %2 = vector.broadcast %0 : vector<1x1x1xf32> to vector<1x1x256xf32>
    %3 = arith.mulf %1, %2 : vector<1x1x256xf32>
    %c0_5 = arith.constant 0 : index
    %c0_6 = arith.constant 0 : index
    %c0_7 = arith.constant 0 : index
    %4 = vector.load %arg4[%c0_5, %c0_6, %c0_7] : memref<1x1x256xf32, #tpu.memory_space<vmem>>, vector<1x1x256xf32>
    tpu.vector_store %arg4[%c0_5, %c0_6, %c0_7], %3 {strides = array<i32>} : memref<1x1x256xf32, #tpu.memory_space<vmem>>, vector<1x1x256xf32>,
    return
  }
  func.func @transform_0(%arg0: i32, %arg1: i32) -> (i32, i32, i32) {
    %c0_i32 = arith.constant 0 : i32
    %c0_i32_0 = arith.constant 0 : i32
    %c0_i32_1 = arith.constant 0 : i32
    return %arg0, %c0_i32, %c0_i32_0 : i32, i32, i32
  }
  func.func @transform_1(%arg0: i32, %arg1: i32) -> (i32, i32, i32) {
    %c0_i32 = arith.constant 0 : i32
    %c0_i32_0 = arith.constant 0 : i32
    return %arg0, %arg1, %c0_i32 : i32, i32, i32
  }
  func.func @transform_2(%arg0: i32, %arg1: i32) -> (i32, i32, i32) {
    %c0_i32 = arith.constant 0 : i32
    %c0_i32_0 = arith.constant 0 : i32
    return %arg0, %arg1, %c0_i32 : i32, i32, i32
  }
}

</mosaic_0001>

<llo_original>
// kernel: tpu_custom_call.1
$region0: #{tpu_custom_call.1}
  #allocation0 [shape = 'u32[]', space=smem, size = 0x4, offset = 0x4, fixed_abs, tag = 'smem constant byte address 0x4 - core index']
  #allocation1 [shape = 'u32[144,128]{1,0:T(1,128)}', space=vmem, size = 0x12000, scoped, tag = 'internal scratch']
  %s0 = inlined_call_operand.vmem [shape: f32[2,1,1], index: 0, kind: input, shape index: {}]
  %s1 = inlined_call_operand.vmem [shape: f32[2,1,256], index: 1, kind: input, shape index: {}]
  %s2 = inlined_call_operand.hbm [shape: f32[2,1,256], index: 2, kind: output, shape index: {}]
  %s3 = sld [smem:[#allocation0]]
  $region41: #{tpu_custom_call.1} parent=0
    _
  %s5 = ssub.s32 1, %s3
  %s6 = scalar_select 0, %s5, %s3
  $region1: #{tpu_custom_call.1} parent=0
    #allocation2 [shape = 'u8[2048]{0}', space=vmem, size = 0x800, scoped, tag = 'output window, operand 0']
    #allocation3 [shape = 's32[2]{0}', space=sflag, size = 0x8, scoped, tag = 'scoped memory for tpu_custom_call.1']
    %7 = vsyncpa [#allocation3], 0
    %s8 = scalar_lea.sflag [#allocation3], 1
    %9 = vsyncpa %s8, 0
    loop: start=0, step=1, limit=4
    $region2: #{tpu_custom_call.1} parent=1 // loop_pre_header
      _
    $region3: #{tpu_custom_call.1} parent=1 // loop_header
      %s11 = sphi 0, %s15
      %p12 = scmp.ge.s32.totalorder %s11, 4
      %s18 = sphi 0, %s30
      %s19 = sphi 0, %s26
      %s20 = sphi 0, %s18
      %s21 = sphi 0, %s19
      %s22 = sphi 0, %s20
      %s23 = sphi 0, %s21
      %s33 = sphi 0, %s35
      %s36 = sphi 0, %s33
      %s37 = sphi 0, %s36
      %s53 = sphi 0, %s37
      %s61 = sphi 0, %s63
      %s64 = sphi 0, %s61
      %s65 = sphi 0, %s64
      %s81 = sphi 0, %s65
      %s89 = sphi 0, %s91
      %s92 = sphi 0, %s89
      %s93 = sphi 0, %s92
      %s109 = sphi 0, %s93
    $region4: #{tpu_custom_call.1} parent=1 // loop_header_branch
      %14 = sbr.rel (%p12) target = $region8
    $region5: #{tpu_custom_call.1} parent=1 // loop_body
      %s16 = ssub.s32 %s11, 1
      %s17 = ssub.s32 %s11, 2
      %s24 = sadd.s32 1, %s19
      %p25 = scmp.ge.s32.totalorder %s24, 1
      %s26 = scalar_select %p25, 0, %s24
      %s27 = sadd.s32 1, %s18
      %s28 = scalar_select %p25, %s27, %s18
      %p29 = scmp.ge.s32.totalorder %s28, 2
      %s30 = scalar_select %p29, 0, %s28
      %s31 = ssub.s32 %s18, %s30
      %p32 = scmp.eq.s32.totalorder %s31, 0
      %s34 = sadd.s32 %s33, 1
      %s35 = scalar_select %p32, %s33, %s34
      %p38 = pneg %p32
      %p39 = scmp.eq.s32.totalorder %s11, 1
      %p40 = por %p38, %p39
      %p41 = scmp.ne.s32.totalorder %s33, %s36
      %p42 = scmp.eq.s32.totalorder %s11, 0
      %p43 = por %p41, %p42
      %p44 = scmp.ne.s32.totalorder %s33, %s36
      %p45 = scmp.eq.s32.totalorder %s16, 1
      %p46 = por %p44, %p45
      %p47 = scmp.ne.s32.totalorder %s36, %s37
      %p48 = scmp.eq.s32.totalorder %s16, 0
      %p49 = por %p47, %p48
      %p50 = scmp.ne.s32.totalorder %s36, %s37
      %p51 = scmp.eq.s32.totalorder %s17, 1
      %p52 = por %p50, %p51
      %p54 = scmp.ne.s32.totalorder %s37, %s53
      %p55 = scmp.eq.s32.totalorder %s17, 0
      %p56 = por %p54, %p55
      %s57 = ssub.s32 %s18, %s30
      %s58 = ssub.s32 %s19, %s26
      %s59 = sor.u32 %s57, %s58
      %p60 = scmp.eq.s32.totalorder %s59, 0
      %s62 = sadd.s32 %s61, 1
      %s63 = scalar_select %p60, %s61, %s62
      %p66 = pneg %p60
      %p67 = scmp.eq.s32.totalorder %s11, 1
      %p68 = por %p66, %p67
      %p69 = scmp.ne.s32.totalorder %s61, %s64
      %p70 = scmp.eq.s32.totalorder %s11, 0
      %p71 = por %p69, %p70
      %p72 = scmp.ne.s32.totalorder %s61, %s64
      %p73 = scmp.eq.s32.totalorder %s16, 1
      %p74 = por %p72, %p73
      %p75 = scmp.ne.s32.totalorder %s64, %s65
      %p76 = scmp.eq.s32.totalorder %s16, 0
      %p77 = por %p75, %p76
      %p78 = scmp.ne.s32.totalorder %s64, %s65
      %p79 = scmp.eq.s32.totalorder %s17, 1
      %p80 = por %p78, %p79
      %p82 = scmp.ne.s32.totalorder %s65, %s81
      %p83 = scmp.eq.s32.totalorder %s17, 0
      %p84 = por %p82, %p83
      %s85 = ssub.s32 %s18, %s30
      %s86 = ssub.s32 %s19, %s26
      %s87 = sor.u32 %s85, %s86
      %p88 = scmp.eq.s32.totalorder %s87, 0
      %s90 = sadd.s32 %s89, 1
      %s91 = scalar_select %p88, %s89, %s90
      %p94 = pneg %p88
      %p95 = scmp.eq.s32.totalorder %s11, 1
      %p96 = por %p94, %p95
      %p97 = scmp.ne.s32.totalorder %s89, %s92
      %p98 = scmp.eq.s32.totalorder %s11, 0
      %p99 = por %p97, %p98
      %p100 = scmp.ne.s32.totalorder %s89, %s92
      %p101 = scmp.eq.s32.totalorder %s16, 1
      %p102 = por %p100, %p101
      %p103 = scmp.ne.s32.totalorder %s92, %s93
      %p104 = scmp.eq.s32.totalorder %s16, 0
      %p105 = por %p103, %p104
      %p106 = scmp.ne.s32.totalorder %s92, %s93
      %p107 = scmp.eq.s32.totalorder %s17, 1
      %p108 = por %p106, %p107
      %p110 = scmp.ne.s32.totalorder %s93, %s109
      %p111 = scmp.eq.s32.totalorder %s17, 0
      %p112 = por %p110, %p111
      %p113 = scmp.le.s32.totalorder 1, %s11
      %p114 = scmp.lt.s32.totalorder %s11, 3
      %p115 = pnand %p113, %p114
      %p116 = pneg %p115
      // Predicated region
      $region9: #{tpu_custom_call.1} parent=5 // pred_check
        _
      $region10: #{tpu_custom_call.1} parent=5 // pred_check_branch
        %118 = sbr.rel (%p115) target = $region12
      $region11: #{tpu_custom_call.1} parent=5 // pred_region
        %s119 = ssub.s32 %s11, 1
      $region12: #{tpu_custom_call.1} parent=5 // pred_fallthru
        _
      %p120 = scmp.lt.s32.totalorder %s11, 2
      // Predicated region
      $region13: #{tpu_custom_call.1} parent=5 // pred_check
        %p121 = pneg %p120
      $region14: #{tpu_custom_call.1} parent=5 // pred_check_branch
        %123 = sbr.rel (%p121) target = $region16
      $region15: #{tpu_custom_call.1} parent=5 // pred_region
        // Predicated region
        $region17: #{tpu_custom_call.1} parent=15 // pred_check
          %p124 = pneg %p43
        $region18: #{tpu_custom_call.1} parent=15 // pred_check_branch
          %126 = sbr.rel (%p124) target = $region20
        $region19: #{tpu_custom_call.1} parent=15 // pred_region
          %p127 = scmp.lt.s32.totalorder %s18, 1
          %s128 = scalar_select %p127, %s18, 1
          %s129 = scalar_lea.vmem %s0, %s128
        $region20: #{tpu_custom_call.1} parent=15 // pred_fallthru
          _
        // Predicated region
        $region21: #{tpu_custom_call.1} parent=15 // pred_check
          %p130 = pneg %p71
        $region22: #{tpu_custom_call.1} parent=15 // pred_check_branch
          %132 = sbr.rel (%p130) target = $region24
        $region23: #{tpu_custom_call.1} parent=15 // pred_region
          %p133 = scmp.lt.s32.totalorder %s18, 1
          %s134 = scalar_select %p133, %s18, 1
          %p135 = scmp.lt.s32.totalorder %s19, 0
          %s136 = scalar_select %p135, %s19, 0
          %s137 = smul.addr %s136, 2
          %s138 = smul.addr %s134, 2
          %s139 = sadd.s32 %s137, %s138
          %s140 = scalar_lea.vmem %s1, %s139
        $region24: #{tpu_custom_call.1} parent=15 // pred_fallthru
          _
      $region16: #{tpu_custom_call.1} parent=5 // pred_fallthru
        _
      %p141 = scmp.le.s32.totalorder 1, %s11
      %p142 = scmp.lt.s32.totalorder %s11, 3
      %p143 = pnand %p141, %p142
      %p144 = pneg %p143
      // Predicated region
      $region25: #{tpu_custom_call.1} parent=5 // pred_check
        _
      $region26: #{tpu_custom_call.1} parent=5 // pred_check_branch
        %146 = sbr.rel (%p143) target = $region28
      $region27: #{tpu_custom_call.1} parent=5 // pred_region
        %s147 = ssub.s32 %s11, 1
        %p148 = scmp.lt.s32.totalorder %s20, 1
        %s149 = scalar_select %p148, %s20, 1
        %s150 = scalar_lea.vmem %s0, %s149
        %p151 = pneg %p49
        %p152 = pneg %p46
        %p153 = scmp.lt.s32.totalorder %s20, 1
        %s154 = scalar_select %p153, %s20, 1
        %p155 = scmp.lt.s32.totalorder %s21, 0
        %s156 = scalar_select %p155, %s21, 0
        %s157 = smul.addr %s156, 2
        %s158 = smul.addr %s154, 2
        %s159 = sadd.s32 %s157, %s158
        %s160 = scalar_lea.vmem %s1, %s159
        %p161 = pneg %p77
        %p162 = pneg %p74
        %p163 = pneg %p105
        %p164 = pneg %p102
        %s165 = sand.u32 %s92, 1
        %s166 = scalar_lea.sflag [#allocation3], %s165
        %s167 = sand.u32 %s92, 1
        %s168 = smul.addr %s167, 2
        %s169 = scalar_lea.vmem [#allocation2], %s168
        %p170 = scmp.lt.s32.totalorder %s20, 1
        %s171 = scalar_select %p170, %s20, 1
        %s172 = scalar_lea.vmem %s0, %s171
        %p173 = scmp.lt.s32.totalorder %s20, 1
        %s174 = scalar_select %p173, %s20, 1
        %p175 = scmp.lt.s32.totalorder %s21, 0
        %s176 = scalar_select %p175, %s21, 0
        %s177 = smul.addr %s176, 2
        %s178 = smul.addr %s174, 2
        %s179 = sadd.s32 %s177, %s178
        %s180 = scalar_lea.vmem %s1, %s179
        %v181 = vld [vmem:[%s172] sm:$0x1]
        %v182 = vld [vmem:[%s180] sm:$0x3]
        %184 = vset.pattern.permute.xlu0 0
        %185 = vperm.xlu0 %184, %v181
        %v186 = vpop.permute.xlu0 %185
        %v188 = vlaneseq
        %v189 = vshrl.u32 %v188, 7
        %v190 = vsub.s32 0, %v189
        %v191 = vrot.slane %v186, %v190
        %v192 = vmul.f32 %v182, %v191
        %v193 = vlaneseq
        %vm194 = vcmp.ge.s32.totalorder %v193, 0
        %vm195 = vcmp.lt.s32.totalorder %v193, 256
        %vm196 = vmand %vm194, %vm195
        %197 = vst.msk [vmem:[%s169] sm:$0x3] %vm196, %v192
        %s198 = sand.u32 %s92, 1
        %s199 = scalar_lea.sflag [#allocation3], %s198
        %s200 = sand.u32 %s92, 1
        %s201 = smul.addr %s200, 2
        %s202 = scalar_lea.vmem [#allocation2], %s201
        // Predicated region
        $region29: #{tpu_custom_call.1} parent=27 // pred_check
          %p203 = pneg %p102
        $region30: #{tpu_custom_call.1} parent=27 // pred_check_branch
          %205 = sbr.rel (%p203) target = $region32
        $region31: #{tpu_custom_call.1} parent=27 // pred_region
          %s207 = ssub.s32 32, 32
          %208 = vsyncadd %s199, %s207
          %s209 = smul.addr %s21, 2
          %s210 = smul.addr %s20, 2
          %s211 = sadd.s32 %s209, %s210
          %s212 = smul.addr %s211, 16
          %s213 = scalar_lea.hbm %s2, %s212
          %s215 = sshll.u32 %s202, 4
          %s216 = int_to_ptr.vmem [resolvable:$true] %s215
          %218 = dma.vmem_to_hbm [thread:$0]  %s216, 32, %s213, %s199
        $region32: #{tpu_custom_call.1} parent=27 // pred_fallthru
          _
      $region28: #{tpu_custom_call.1} parent=5 // pred_fallthru
        _
      %p219 = scmp.le.s32.totalorder 2, %s11
      // Predicated region
      $region33: #{tpu_custom_call.1} parent=5 // pred_check
        %p220 = pneg %p219
      $region34: #{tpu_custom_call.1} parent=5 // pred_check_branch
        %222 = sbr.rel (%p220) target = $region36
      $region35: #{tpu_custom_call.1} parent=5 // pred_region
        %s223 = ssub.s32 %s11, 2
        // Predicated region
        $region37: #{tpu_custom_call.1} parent=35 // pred_check
          %p224 = pneg %p108
        $region38: #{tpu_custom_call.1} parent=35 // pred_check_branch
          %226 = sbr.rel (%p224) target = $region40
        $region39: #{tpu_custom_call.1} parent=35 // pred_region
          %s227 = sand.u32 %s93, 1
          %s228 = scalar_lea.sflag [#allocation3], %s227
          %s229 = sand.u32 %s93, 1
          %s230 = smul.addr %s229, 2
          %s231 = scalar_lea.vmem [#allocation2], %s230
          %232 = dma.done %s228, 32
        $region40: #{tpu_custom_call.1} parent=35 // pred_fallthru
          _
      $region36: #{tpu_custom_call.1} parent=5 // pred_fallthru
        _
    $region6: #{tpu_custom_call.1} parent=1 // loop_footer
      %s15 = sadd.s32 1, %s11
    $region7: #{tpu_custom_call.1} parent=1 // loop_footer_branch
      %10 = sbr.rel target = $region3
    $region8: #{tpu_custom_call.1} parent=1 // loop_exit
      _
    %233 = vsyncpa [#allocation3], 1
    %s234 = scalar_lea.sflag [#allocation3], 1
    %235 = vsyncpa %s234, 1

</llo_original>
